<compile_context>
chip_gen: v5e
topology: v5e:2x2
jax: 0.10.0
libtpu: 0.0.40
codegen_flags: <defaults>
</compile_context>

<pallas_src>
import functools

import numpy as np
import jax
import jax.numpy as jnp
from jax import lax
from jax.experimental import pallas as pl
from jax.experimental.pallas import tpu as pltpu

EPSILON = float(np.finfo(float).eps)        # float64 eps, same constant as the torch code
_EPS32 = float(np.finfo(np.float32).eps)    # clamp_probs eps for float32

_TILE_BYTES = 4 * 1024 * 1024               # per-stream f32 tile budget (~4 MiB)
_VMEM_LIMIT = 48 * 1024 * 1024              # explicit scoped-VMEM limit (fits v7x 64 MiB)
_MIN_GRID_BLOCKS = 8                        # aim for >= 8 grid blocks (megacore / pipelining)


def _cdiv(a, b):
    return -(-a // b)


def _round_up(x, m):
    return _cdiv(x, m) * m


# ---------------------------------------------------------------------------
# In-kernel math
# ---------------------------------------------------------------------------

def _gate_from_u(u, feat_row, x_tile, *, inv_temperature, fast):
    """BinConcrete gate math for one tile.

    feat_row: (1, Dw) per-feature precompute.
      fast (temperature == 1): feat_row = exp(-drift);
          m = u / (u + exp(-drift)*(1-u))  ==  sigmoid(drift + log u - log(1-u))
      else: feat_row = drift; literal log/sigmoid formulation.
    """
    u = jnp.clip(u, _EPS32, 1.0 - _EPS32)                          # clamp_probs
    if fast:
        m = u / (u + feat_row * (1.0 - u))
    else:
        noise = jnp.log(u + EPSILON) - jnp.log(1.0 - u + EPSILON)
        m = jax.nn.sigmoid((feat_row + noise) * inv_temperature)
    return x_tile * m, m


def _uniform_from_hash(cnt, seed):
    """Uniform(0,1) noise from an int32 counter via the lowbias32 hash.

    Only int32 add/xor/shift/mul ops -> portable to both Mosaic and interpret mode
    (no pltpu.prng_* primitives, which lack a CPU/interpret lowering).
    """
    h = cnt ^ seed
    h = h ^ ((h >> 16) & jnp.int32(0x0000FFFF))     # logical >>16 via arith shift + mask
    h = h * jnp.int32(0x21F0AAAD)                    # wraps mod 2^32
    h = h ^ ((h >> 15) & jnp.int32(0x0001FFFF))
    h = h * jnp.int32(0x735A2D97)
    h = h ^ ((h >> 15) & jnp.int32(0x0001FFFF))
    r24 = h & jnp.int32(0x00FFFFFF)                  # 24 random bits, non-negative
    return r24.astype(jnp.float32) * jnp.float32(1.0 / 16777216.0)


def _hash_noise_kernel(seed_ref, feat_ref, x_ref, *out_refs,
                       b_orig, d_orig, g, inv_temperature, fast):
    """Production path: noise hashed on-chip; no HBM noise stream."""
    i = pl.program_id(0)                  # row-tile index
    s = pl.program_id(1)                  # sample index
    tr, dw = x_ref.shape
    row = lax.broadcasted_iota(jnp.int32, (tr, dw), 0)
    col = lax.broadcasted_iota(jnp.int32, (tr, dw), 1)
    # Counter = logical (sample, row, feature) index -> random stream is invariant to
    # tiling / packing / padding (padded elements get discarded noise).
    cnt = (s * b_orig + (i * tr + row) * g) * d_orig + col
    u = _uniform_from_hash(cnt, seed_ref[0])
    xo, m = _gate_from_u(u, feat_ref[...], x_ref[...],
                         inv_temperature=inv_temperature, fast=fast)
    out_refs[0][...] = xo
    if len(out_refs) > 1:
        out_refs[1][...] = m


def _external_u_kernel(feat_ref, x_ref, u_ref, *out_refs, inv_temperature, fast):
    """Reference-check path: identical math, uniform noise supplied from HBM."""
    xo, m = _gate_from_u(u_ref[...], feat_ref[...], x_ref[...],
                         inv_temperature=inv_temperature, fast=fast)
    out_refs[0][...] = xo
    if len(out_refs) > 1:
        out_refs[1][...] = m


# ---------------------------------------------------------------------------
# Wrapper
# ---------------------------------------------------------------------------

def concrete_gates_forward(x, logits, seed=0, *, temperature=1.0, implicit_temp=0.2,
                           n_samples=None, return_mask=True, fast_sigmoid=True, u=None):
    """JAX/Pallas equivalent of ConcreteGates.forward.

    x:      (B, D) float32
    logits: (D,)   float32 (the nn.Parameter)
    seed:   int seed for the in-kernel counter-hash RNG (ignored if `u` is supplied)
    u:      optional (n, B, D) uniform noise for exact reference comparison
    Returns (x * m, m) (or x * m alone if return_mask=False); shapes (B, D) when
    n_samples is falsy (mirroring torch's squeeze(0)), else (n, B, D).
    """
    n = int(n_samples) if n_samples else 1          # torch truthiness semantics
    B, D = x.shape
    fast = bool(fast_sigmoid) and float(temperature) == 1.0
    inv_t = 1.0 / float(temperature)

    # Per-feature precompute in the wrapper (removes per-tile logsigmoid work).
    l = logits.astype(jnp.float32) / jnp.float32(implicit_temp)
    drift = jax.nn.log_sigmoid(l + EPSILON) - jax.nn.log_sigmoid(-l + EPSILON)
    feat = jnp.exp(-drift) if fast else drift
    feat_pad = 1.0 if fast else 0.0

    # Lane packing for small power-of-two D (divisors of 128); else pad D to 128k.
    if D < 128 and 128 % D == 0:
        g, Dw = 128 // D, 128
    else:
        g, Dw = 1, _round_up(D, 128)

    # Row tiling in folded-row units: VMEM budget + enough blocks for megacore,
    # with padding bounded by 8 rows per tile (not round_up(B, tile)).
    R8 = _round_up(_cdiv(B, g), 8)
    max_rows = max(8, (_TILE_BYTES // (4 * Dw)) // 8 * 8)
    nrt = _cdiv(R8, max_rows)
    nrt = max(nrt, min(R8 // 8, _cdiv(_MIN_GRID_BLOCKS, n)), 1)
    tr = _round_up(_cdiv(R8, nrt), 8)
    nrt = _cdiv(R8, tr)
    Rp = nrt * tr                     # folded rows after bounded padding
    Bp = Rp * g                       # original rows after padding
    grid = (nrt, n)

    row_pad = Bp - B
    col_pad = (Dw - D) if g == 1 else 0

    xw = x.astype(jnp.float32)
    if row_pad or col_pad:
        xw = jnp.pad(xw, ((0, row_pad), (0, col_pad)))
    if g > 1:
        xw = xw.reshape(Rp, Dw)       # free row-major reshape -> lane-dense layout

    featw = jnp.tile(feat, g) if g > 1 else feat
    if col_pad:
        featw = jnp.pad(featw, (0, col_pad), constant_values=feat_pad)
    featw = featw.reshape(1, Dw)

    n_out = 2 if return_mask else 1
    out_struct = jax.ShapeDtypeStruct((n, Rp, Dw), jnp.float32)
    out_shape = tuple(out_struct for _ in range(n_out)) if n_out > 1 else out_struct

    compiler_params = pltpu.CompilerParams(
        dimension_semantics=("parallel", "parallel"),
        vmem_limit_bytes=_VMEM_LIMIT)
    elems = n * Rp * Dw
    cost = pl.CostEstimate(
        flops=12 * elems,
        transcendentals=(1 if fast else 3) * elems,
        bytes_accessed=4 * (Rp * Dw + n_out * elems + (elems if u is not None else 0)))

    if u is None:
        # Production path: seed via scalar prefetch, noise hashed on-chip.
        kern = functools.partial(_hash_noise_kernel, b_orig=B, d_orig=D, g=g,
                                 inv_temperature=inv_t, fast=fast)
        out_bs = pl.BlockSpec((None, tr, Dw), lambda i, s, sd: (s, i, 0))
        res = pl.pallas_call(
            kern,
            out_shape=out_shape,
            grid_spec=pltpu.PrefetchScalarGridSpec(
                num_scalar_prefetch=1,
                grid=grid,
                in_specs=[
                    pl.BlockSpec((1, Dw), lambda i, s, sd: (0, 0)),     # feat (resident)
                    pl.BlockSpec((tr, Dw), lambda i, s, sd: (i, 0)),    # x (reused over s)
                ],
                out_specs=(out_bs,) * n_out if n_out > 1 else out_bs),
            compiler_params=compiler_params,
            cost_estimate=cost,
        )(jnp.asarray([seed], dtype=jnp.int32), featw, xw)
    else:
        # Reference-check path: externally supplied uniform noise (exact comparison).
        uw = jnp.asarray(u, jnp.float32).reshape(n, B, D)
        if row_pad or col_pad:
            uw = jnp.pad(uw, ((0, 0), (0, row_pad), (0, col_pad)), constant_values=0.5)
        if g > 1:
            uw = uw.reshape(n, Rp, Dw)
        kern = functools.partial(_external_u_kernel, inv_temperature=inv_t, fast=fast)
        out_bs = pl.BlockSpec((None, tr, Dw), lambda i, s: (s, i, 0))
        res = pl.pallas_call(
            kern,
            out_shape=out_shape,
            grid=grid,
            in_specs=[
                pl.BlockSpec((1, Dw), lambda i, s: (0, 0)),             # feat
                pl.BlockSpec((tr, Dw), lambda i, s: (i, 0)),            # x (reused over s)
                pl.BlockSpec((None, tr, Dw), lambda i, s: (s, i, 0)),   # u
            ],
            out_specs=(out_bs,) * n_out if n_out > 1 else out_bs,
            compiler_params=compiler_params,
            cost_estimate=cost,
        )(featw, xw, uw)

    outs = res if isinstance(res, (tuple, list)) else (res,)

    def _restore(a):
        if g > 1:
            a = a.reshape(n, Bp, D)   # free reshape back to (n, rows, features)
        if a.shape[1] != B or a.shape[2] != D:
            a = a[:, :B, :D]
        return a[0] if not n_samples else a        # mirror torch's squeeze(0)

    xo = _restore(outs[0])
    if return_mask:
        return xo, _restore(outs[1])
    return xo


def init_concrete_gates_logits(input_size, init=0.99, implicit_temp=0.2):
    """Deterministic parameter init matching the PyTorch __init__."""
    init_logit = -np.log(1.0 / init - 1.0) * implicit_temp
    return jnp.full((input_size,), init_logit, dtype=jnp.float32)


def concrete_gates_probs(logits, implicit_temp=0.2):
    """Equivalent of the .probs property."""
    return jax.nn.sigmoid(logits / implicit_temp)


# TODO(synk): get_inds / get_left_inds (argsort / threshold feature selection) are
# host-side utilities outside the forward hot path; not implemented as a kernel.


def _reference_forward(x, logits, u, temperature, implicit_temp):
    """Pure-JAX reference (literal PyTorch math, same noise) for correctness checks."""
    l = logits[None, None, :] / implicit_temp
    uc = jnp.clip(u, _EPS32, 1.0 - _EPS32)
    m = jax.nn.sigmoid((jax.nn.log_sigmoid(l + EPSILON)
                        - jax.nn.log_sigmoid(-l + EPSILON)
                        + jnp.log(uc + EPSILON)
                        - jnp.log(1.0 - uc + EPSILON)) / temperature)
    return x[None] * m, m


if __name__ == "__main__":
    input_size = 32
    temperature = 1.0
    implicit_temp = 0.2
    batch = 8

    key = jax.random.PRNGKey(0)
    kx, kx2, ku2, kl2, kx3, ku3, kl3 = jax.random.split(key, 7)

    x = jax.random.normal(kx, (batch, input_size), dtype=jnp.float32)
    logits = init_concrete_gates_logits(input_size, init=0.99, implicit_temp=implicit_temp)

    # --- 1) production path: in-kernel hash noise, lane-packed (D=32 -> g=4) ---
    out, mask = concrete_gates_forward(x, logits, seed=42, temperature=temperature,
                                       implicit_temp=implicit_temp, return_mask=True)
    jax.block_until_ready((out, mask))
    assert out.shape == (batch, input_size) and mask.shape == (batch, input_size)
    mask_np = np.asarray(mask)
    assert np.all(np.isfinite(mask_np))
    assert np.all(mask_np > 0.0) and np.all(mask_np <= 1.0)
    assert mask_np.mean() > 0.5                       # init=0.99 -> gates mostly open
    np.testing.assert_allclose(np.asarray(out), np.asarray(x) * mask_np,
                               rtol=1e-6, atol=1e-6)

    # deterministic for a fixed seed
    out_b, mask_b = concrete_gates_forward(x, logits, seed=42, temperature=temperature,
                                           implicit_temp=implicit_temp)
    np.testing.assert_array_equal(np.asarray(mask), np.asarray(mask_b))

    # single-output variant (return_mask=False) writes only x*m and matches
    out_nm = concrete_gates_forward(x, logits, seed=42, temperature=temperature,
                                    implicit_temp=implicit_temp, return_mask=False)
    np.testing.assert_allclose(np.asarray(out_nm), np.asarray(out), rtol=1e-7, atol=1e-7)

    # n_samples path: x reused across samples in-kernel; samples get distinct noise
    out_n, mask_n = concrete_gates_forward(x, logits, seed=7, temperature=temperature,
                                           implicit_temp=implicit_temp, n_samples=3)
    jax.block_until_ready((out_n, mask_n))
    assert out_n.shape == (3, batch, input_size) and mask_n.shape == (3, batch, input_size)
    assert not np.allclose(np.asarray(mask_n[0]), np.asarray(mask_n[1]))

    # --- 2) exact math vs pure-JAX reference (external noise), temperature==1 fast path,
    #        shapes deliberately NOT (8,128)-aligned to exercise padding + tiling ---
    B2, D2 = 100, 200
    x2 = jax.random.normal(kx2, (B2, D2), dtype=jnp.float32)
    logits2 = 0.5 * jax.random.normal(kl2, (D2,), dtype=jnp.float32)
    u2 = jax.random.uniform(ku2, (2, B2, D2), dtype=jnp.float32)
    out_ext, m_ext = concrete_gates_forward(x2, logits2, temperature=1.0,
                                            implicit_temp=implicit_temp, n_samples=2, u=u2)
    jax.block_until_ready((out_ext, m_ext))
    ref_out, ref_m = _reference_forward(x2, logits2, u2, 1.0, implicit_temp)
    np.testing.assert_allclose(np.asarray(out_ext), np.asarray(ref_out), rtol=2e-5, atol=2e-5)
    np.testing.assert_allclose(np.asarray(m_ext), np.asarray(ref_m), rtol=2e-5, atol=2e-5)

    # --- 3) general-temperature branch + lane-packed small-D path vs reference ---
    B3, D3 = 10, 32
    x3 = jax.random.normal(kx3, (B3, D3), dtype=jnp.float32)
    logits3 = 0.5 * jax.random.normal(kl3, (D3,), dtype=jnp.float32)
    u3 = jax.random.uniform(ku3, (1, B3, D3), dtype=jnp.float32)
    out3, m3 = concrete_gates_forward(x3, logits3, temperature=0.7,
                                      implicit_temp=implicit_temp, n_samples=1, u=u3)
    jax.block_until_ready((out3, m3))
    ref3_out, ref3_m = _reference_forward(x3, logits3, u3, 0.7, implicit_temp)
    np.testing.assert_allclose(np.asarray(out3), np.asarray(ref3_out), rtol=2e-5, atol=2e-5)
    np.testing.assert_allclose(np.asarray(m3), np.asarray(ref3_m), rtol=2e-5, atol=2e-5)

    print("KERNEL_OK")
</pallas_src>

<mosaic_0001>
module attributes {stable_mosaic.version = 11 : i64} {
  func.func @_hash_noise_kernel(%arg0: i32, %arg1: i32, %arg2: memref<1xi32, #tpu.memory_space<smem>>, %arg3: memref<1x128xf32, #tpu.memory_space<vmem>>, %arg4: memref<8x128xf32, #tpu.memory_space<vmem>>, %arg5: memref<1x8x128xf32, #tpu.memory_space<vmem>>, %arg6: memref<1x8x128xf32, #tpu.memory_space<vmem>>) attributes {dimension_semantics = [#tpu.dimension_semantics<parallel>, #tpu.dimension_semantics<parallel>], iteration_bounds = array<i64: 1, 1>, scalar_prefetch = 1 : i64, scratch_operands = 0 : i64, tpu.core_type = #tpu.core_type<tc>, window_params = [{pipeline_mode = #tpu.pipeline_mode<synchronous>, transform_indices = @transform_0, window_bounds = array<i64: 1, 128>}, {transform_indices = @transform_1, window_bounds = array<i64: 8, 128>}, {transform_indices = @transform_2, window_bounds = array<i64: 1, 8, 128>}, {transform_indices = @transform_3, window_bounds = array<i64: 1, 8, 128>}]} {
    %0 = tpu.iota {dimensions = array<i32: 0>} : vector<8x128xi32>
    %1 = tpu.iota {dimensions = array<i32: 1>} : vector<8x128xi32>
    %c8_i32 = arith.constant 8 : i32
    %2 = arith.muli %arg1, %c8_i32 : i32
    %c8_i32_0 = arith.constant 8 : i32
    %3 = arith.muli %arg0, %c8_i32_0 : i32
    %4 = vector.broadcast %3 : i32 to vector<8x128xi32>
    %5 = arith.addi %4, %0 : vector<8x128xi32>
    %c4_i32 = arith.constant 4 : i32
    %6 = vector.broadcast %c4_i32 : i32 to vector<8x128xi32>
    %7 = arith.muli %5, %6 : vector<8x128xi32>
    %8 = vector.broadcast %2 : i32 to vector<8x128xi32>
    %9 = arith.addi %8, %7 : vector<8x128xi32>
    %c32_i32 = arith.constant 32 : i32
    %10 = vector.broadcast %c32_i32 : i32 to vector<8x128xi32>
    %11 = arith.muli %9, %10 : vector<8x128xi32>
    %12 = arith.addi %11, %1 : vector<8x128xi32>
    %c0 = arith.constant 0 : index
    %13 = memref.load %arg2[%c0] : memref<1xi32, #tpu.memory_space<smem>>
    %14 = vector.broadcast %13 : i32 to vector<8x128xi32>
    %15 = arith.xori %12, %14 : vector<8x128xi32>
    %c16_i32 = arith.constant 16 : i32
    %16 = vector.broadcast %c16_i32 : i32 to vector<8x128xi32>
    %17 = arith.shrsi %15, %16 : vector<8x128xi32>
    %c65535_i32 = arith.constant 65535 : i32
    %18 = vector.broadcast %c65535_i32 : i32 to vector<8x128xi32>
    %19 = arith.andi %17, %18 : vector<8x128xi32>
    %20 = arith.xori %15, %19 : vector<8x128xi32>
    %c569420461_i32 = arith.constant 569420461 : i32
    %21 = vector.broadcast %c569420461_i32 : i32 to vector<8x128xi32>
    %22 = arith.muli %20, %21 : vector<8x128xi32>
    %c15_i32 = arith.constant 15 : i32
    %23 = vector.broadcast %c15_i32 : i32 to vector<8x128xi32>
    %24 = arith.shrsi %22, %23 : vector<8x128xi32>
    %c131071_i32 = arith.constant 131071 : i32
    %25 = vector.broadcast %c131071_i32 : i32 to vector<8x128xi32>
    %26 = arith.andi %24, %25 : vector<8x128xi32>
    %27 = arith.xori %22, %26 : vector<8x128xi32>
    %c1935289751_i32 = arith.constant 1935289751 : i32
    %28 = vector.broadcast %c1935289751_i32 : i32 to vector<8x128xi32>
    %29 = arith.muli %27, %28 : vector<8x128xi32>
    %c15_i32_1 = arith.constant 15 : i32
    %30 = vector.broadcast %c15_i32_1 : i32 to vector<8x128xi32>
    %31 = arith.shrsi %29, %30 : vector<8x128xi32>
    %c131071_i32_2 = arith.constant 131071 : i32
    %32 = vector.broadcast %c131071_i32_2 : i32 to vector<8x128xi32>
    %33 = arith.andi %31, %32 : vector<8x128xi32>
    %34 = arith.xori %29, %33 : vector<8x128xi32>
    %c16777215_i32 = arith.constant 16777215 : i32
    %35 = vector.broadcast %c16777215_i32 : i32 to vector<8x128xi32>
    %36 = arith.andi %34, %35 : vector<8x128xi32>
    %37 = arith.sitofp %36 : vector<8x128xi32> to vector<8x128xf32>
    %cst = arith.constant 5.96046448E-8 : f32
    %38 = vector.broadcast %cst : f32 to vector<8x128xf32>
    %39 = arith.mulf %37, %38 : vector<8x128xf32>
    %c0_3 = arith.constant 0 : index
    %c0_4 = arith.constant 0 : index
    %40 = vector.load %arg3[%c0_3, %c0_4] : memref<1x128xf32, #tpu.memory_space<vmem>>, vector<1x128xf32>
    %c0_5 = arith.constant 0 : index
    %c0_6 = arith.constant 0 : index
    %41 = vector.load %arg4[%c0_5, %c0_6] : memref<8x128xf32, #tpu.memory_space<vmem>>, vector<8x128xf32>
    %cst_7 = arith.constant 1.1920929E-7 : f32
    %cst_8 = arith.constant 0.99999988 : f32
    %42 = vector.broadcast %cst_7 : f32 to vector<8x128xf32>
    %43 = arith.maximumf %42, %39 : vector<8x128xf32>
    %44 = vector.broadcast %cst_8 : f32 to vector<8x128xf32>
    %45 = arith.minimumf %44, %43 : vector<8x128xf32>
    %cst_9 = arith.constant 1.000000e+00 : f32
    %46 = vector.broadcast %cst_9 : f32 to vector<8x128xf32>
    %47 = arith.subf %46, %45 : vector<8x128xf32>
    %48 = vector.broadcast %40 : vector<1x128xf32> to vector<8x128xf32>
    %49 = arith.mulf %48, %47 : vector<8x128xf32>
    %50 = arith.addf %45, %49 : vector<8x128xf32>
    %51 = arith.divf %45, %50 : vector<8x128xf32>
    %52 = arith.mulf %41, %51 : vector<8x128xf32>
    %c0_10 = arith.constant 0 : index
    %c0_11 = arith.constant 0 : index
    %c0_12 = arith.constant 0 : index
    %53 = vector.load %arg5[%c0_10, %c0_11, %c0_12] : memref<1x8x128xf32, #tpu.memory_space<vmem>>, vector<1x8x128xf32>
    %54 = vector.shape_cast %53 : vector<1x8x128xf32> to vector<8x128xf32>
    %55 = vector.shape_cast %52 : vector<8x128xf32> to vector<1x8x128xf32>
    tpu.vector_store %arg5[%c0_10, %c0_11, %c0_12], %55 {strides = array<i32>} : memref<1x8x128xf32, #tpu.memory_space<vmem>>, vector<1x8x128xf32>,
    %c0_13 = arith.constant 0 : index
    %c0_14 = arith.constant 0 : index
    %c0_15 = arith.constant 0 : index
    %56 = vector.load %arg6[%c0_13, %c0_14, %c0_15] : memref<1x8x128xf32, #tpu.memory_space<vmem>>, vector<1x8x128xf32>
    %57 = vector.shape_cast %56 : vector<1x8x128xf32> to vector<8x128xf32>
    %58 = vector.shape_cast %51 : vector<8x128xf32> to vector<1x8x128xf32>
    tpu.vector_store %arg6[%c0_13, %c0_14, %c0_15], %58 {strides = array<i32>} : memref<1x8x128xf32, #tpu.memory_space<vmem>>, vector<1x8x128xf32>,
    return
  }
  func.func @transform_0(%arg0: i32, %arg1: i32, %arg2: memref<1xi32, #tpu.memory_space<smem>>) -> (i32, i32) {
    %c0_i32 = arith.constant 0 : i32
    %c0_i32_0 = arith.constant 0 : i32
    %c0_i32_1 = arith.constant 0 : i32
    return %c0_i32, %c0_i32_0 : i32, i32
  }
  func.func @transform_1(%arg0: i32, %arg1: i32, %arg2: memref<1xi32, #tpu.memory_space<smem>>) -> (i32, i32) {
    %c0_i32 = arith.constant 0 : i32
    %c0_i32_0 = arith.constant 0 : i32
    return %arg0, %c0_i32 : i32, i32
  }
  func.func @transform_2(%arg0: i32, %arg1: i32, %arg2: memref<1xi32, #tpu.memory_space<smem>>) -> (i32, i32, i32) {
    %c0_i32 = arith.constant 0 : i32
    %c0_i32_0 = arith.constant 0 : i32
    return %arg1, %arg0, %c0_i32 : i32, i32, i32
  }
  func.func @transform_3(%arg0: i32, %arg1: i32, %arg2: memref<1xi32, #tpu.memory_space<smem>>) -> (i32, i32, i32) {
    %c0_i32 = arith.constant 0 : i32
    %c0_i32_0 = arith.constant 0 : i32
    return %arg1, %arg0, %c0_i32 : i32, i32, i32
  }
}

</mosaic_0001>

<llo_original>
// kernel: tpu_custom_call.1
$region0: #{tpu_custom_call.1}
  #allocation0 [shape = 'u32[]', space=smem, size = 0x4, offset = 0x4, fixed_abs, tag = 'smem constant byte address 0x4 - core index']
  #allocation1 [shape = 'u32[72,128]{1,0:T(1,128)}', space=vmem, size = 0x9000, scoped, tag = 'internal scratch']
  #allocation2 [shape = 's32[1]{0}', space=sflag, size = 0x4, scoped, tag = 'scoped memory for tpu_custom_call.1']
  #allocation3 [shape = 's32[1]{0:T(128)S(6)}', space=smem, size = 0x200, scoped, tag = 'prefetched SMEM operand 0']
  %s0 = inlined_call_operand.<no memory space> [shape: s32[1], index: 0, kind: input, shape index: {}]
  %s1 = inlined_call_operand.vmem [shape: f32[1,128], index: 1, kind: input, shape index: {}]
  %s2 = inlined_call_operand.hbm [shape: f32[8,128], index: 2, kind: input, shape index: {}]
  %s3 = inlined_call_operand.hbm [shape: f32[1,8,128], index: 3, kind: output, shape index: {0}]
  %s4 = inlined_call_operand.hbm [shape: f32[1,8,128], index: 4, kind: output, shape index: {1}]
  %5 = xla_tuple %s3, %s4
  %s6 = sld [smem:[#allocation0]]
  $region30: #{tpu_custom_call.1} parent=0
    _
  %s8 = ssub.s32 1, %s6
  %s9 = scalar_select 0, %s8, %s6
  %10 = sst [smem:[#allocation3]] %s0
  $region1: #{tpu_custom_call.1} parent=0
    #allocation4 [shape = 'u8[4096]{0}', space=vmem, size = 0x1000, scoped, tag = 'input window, operand 2, single buffered']
    #allocation5 [shape = 's32[1]{0}', space=sflag, size = 0x4, scoped, tag = 'scoped memory for tpu_custom_call.1']
    #allocation6 [shape = 's32[1]{0}', space=sflag, size = 0x4, scoped, tag = 'scoped memory for tpu_custom_call.1']
    #allocation7 [shape = 'u8[4096]{0}', space=vmem, size = 0x1000, scoped, tag = 'output window, operand 0, single buffered']
    #allocation8 [shape = 'u8[4096]{0}', space=vmem, size = 0x1000, scoped, tag = 'output window, operand 1, single buffered']
    #allocation9 [shape = 's32[1]{0}', space=sflag, size = 0x4, scoped, tag = 'scoped memory for tpu_custom_call.1']
    %11 = vsyncpa [#allocation5], 0
    %12 = vsyncpa [#allocation6], 0
    %13 = vsyncpa [#allocation9], 0
    // Predicated region
    $region2: #{tpu_custom_call.1} parent=1 // pred_check
      _
    $region3: #{tpu_custom_call.1} parent=1 // pred_check_branch
      %15 = sbr.rel (0) target = $region5
    $region4: #{tpu_custom_call.1} parent=1 // pred_region
      _
    $region5: #{tpu_custom_call.1} parent=1 // pred_fallthru
      _
    // Predicated region
    $region6: #{tpu_custom_call.1} parent=1 // pred_check
      _
    $region7: #{tpu_custom_call.1} parent=1 // pred_check_branch
      %17 = sbr.rel (0) target = $region9
    $region8: #{tpu_custom_call.1} parent=1 // pred_region
      %19 = vsyncadd [#allocation5], 0
      %s21 = sshll.u32 %s2, 4
      %s22 = int_to_ptr.hbm [resolvable:$true] %s21
      %s23 = sshll.u32 [#allocation4], 4
      %s24 = int_to_ptr.vmem [resolvable:$true] %s23
      %26 = dma.hbm_to_vmem [thread:$0]  %s22, 128, %s24, [#allocation5]
    $region9: #{tpu_custom_call.1} parent=1 // pred_fallthru
      _
    // Predicated region
    $region10: #{tpu_custom_call.1} parent=1 // pred_check
      _
    $region11: #{tpu_custom_call.1} parent=1 // pred_check_branch
      %28 = sbr.rel (0) target = $region13
    $region12: #{tpu_custom_call.1} parent=1 // pred_region
      %30 = dma.done [#allocation5], 128
    $region13: #{tpu_custom_call.1} parent=1 // pred_fallthru
      _
    %v31 = vlaneseq
    %v32 = vshrl.u32 %v31, 7
    %v33 = vlaneseq
    %v34 = vand.u32 %v33, 127
    %s35 = smul.u32 0, 8
    %s36 = smul.u32 0, 8
    %v37 = vstv %s36
    %v38 = vadd.s32 %v37, %v32
    %v39 = vmul.u32 %v38, 4
    %v40 = vstv %s35
    %v41 = vadd.s32 %v40, %v39
    %v42 = vmul.u32 %v41, 32
    %v43 = vadd.s32 %v42, %v34
    %s44 = sld [smem:[#allocation3]]
    %v45 = vstv %s44
    %v46 = vxor.u32 %v43, %v45
    %v47 = vshra.s32 %v46, 16
    %v48 = vand.u32 %v47, 65535
    %v49 = vxor.u32 %v46, %v48
    %v50 = vmul.u32 %v49, 569420461
    %v51 = vshra.s32 %v50, 15
    %v52 = vand.u32 %v51, 131071
    %v53 = vxor.u32 %v50, %v52
    %v54 = vmul.u32 %v53, 1935289751
    %v55 = vshra.s32 %v54, 15
    %v56 = vand.u32 %v55, 131071
    %v57 = vxor.u32 %v54, %v56
    %v58 = vand.u32 %v57, 16777215
    %v59 = vcvt.s32.f32 %v58
    %v60 = vmul.f32 %v59, 5.9604645e-08
    %v61 = vld [vmem:[%s1] sm:$0x1]
    %v62 = vld [vmem:[#allocation4] sm:$0xff]
    %v63 = vmax.f32 %v60, 1.1920929e-07
    %v64 = vmin.f32 %v63, 0.9999999
    %v65 = vsub.f32 1.0, %v64
    %v67 = vperm.slane %v61, 0
    %v69 = vmul.f32 %v67, %v65
    %v70 = vadd.f32 %v64, %v69
    %v71 = vrcp.pop %v70
    %v72 = vmul.f32 %v70, %v71
    %v73 = vsub.f32 1.0, %v72
    %v74 = vmul.f32 %v71, %v73
    %v75 = vadd.f32 %v71, %v74
    %vm76 = vweird.f32 %v70
    %vm77 = vweird.f32 %v71
    %vm78 = vmor %vm76, %vm77
    %v79 = vsel %vm78, %v71, %v75
    %v80 = vand.u32 2147483647, %v70
    %vm81 = vcmp.eq.f32.partialorder %v80, 8.507059e+37
    %v82 = vand.u32 %v70, 2147483648
    %v83 = vor.u32 1.1754944e-38, %v82
    %v84 = vsel %vm81, %v83, %v79
    %v85 = vmul.f32 %v64, %v84
    %v86 = vmul.f32 %v62, %v85
    %87 = vst [vmem:[#allocation7] sm:$0xff] %v86
    %88 = vst [vmem:[#allocation8] sm:$0xff] %v85
    // Predicated region
    $region14: #{tpu_custom_call.1} parent=1 // pred_check
      _
    $region15: #{tpu_custom_call.1} parent=1 // pred_check_branch
      %90 = sbr.rel (0) target = $region17
    $region16: #{tpu_custom_call.1} parent=1 // pred_region
      %92 = vsyncadd [#allocation6], 0
      %s94 = sshll.u32 [#allocation7], 4
      %s95 = int_to_ptr.vmem [resolvable:$true] %s94
      %s96 = sshll.u32 %s3, 4
      %s97 = int_to_ptr.hbm [resolvable:$true] %s96
      %99 = dma.vmem_to_hbm [thread:$0]  %s95, 128, %s97, [#allocation6]
    $region17: #{tpu_custom_call.1} parent=1 // pred_fallthru
      _
    // Predicated region
    $region18: #{tpu_custom_call.1} parent=1 // pred_check
      _
    $region19: #{tpu_custom_call.1} parent=1 // pred_check_branch
      %101 = sbr.rel (0) target = $region21
    $region20: #{tpu_custom_call.1} parent=1 // pred_region
      %103 = vsyncadd [#allocation9], 0
      %s105 = sshll.u32 [#allocation8], 4
      %s106 = int_to_ptr.vmem [resolvable:$true] %s105
      %s107 = sshll.u32 %s4, 4
      %s108 = int_to_ptr.hbm [resolvable:$true] %s107
      %110 = dma.vmem_to_hbm [thread:$0]  %s106, 128, %s108, [#allocation9]
    $region21: #{tpu_custom_call.1} parent=1 // pred_fallthru
      _
    // Predicated region
    $region22: #{tpu_custom_call.1} parent=1 // pred_check
      _
    $region23: #{tpu_custom_call.1} parent=1 // pred_check_branch
      %112 = sbr.rel (0) target = $region25
    $region24: #{tpu_custom_call.1} parent=1 // pred_region
      %114 = dma.done [#allocation6], 128
    $region25: #{tpu_custom_call.1} parent=1 // pred_fallthru
      _
    // Predicated region
    $region26: #{tpu_custom_call.1} parent=1 // pred_check
      _
    $region27: #{tpu_custom_call.1} parent=1 // pred_check_branch
      %116 = sbr.rel (0) target = $region29
    $region28: #{tpu_custom_call.1} parent=1 // pred_region
      %118 = dma.done [#allocation9], 128
    $region29: #{tpu_custom_call.1} parent=1 // pred_fallthru
      _
    %119 = vsyncpa [#allocation5], 1
    %120 = vsyncpa [#allocation6], 1
    %121 = vsyncpa [#allocation9], 1

</llo_original>
